<compile_context>
chip_gen: v7x
topology: tpu7x:2x2x1
jax: 0.10.0
libtpu: 0.0.40
codegen_flags: <defaults>
</compile_context>

<pallas_src>
import jax
import jax.numpy as jnp
from jax import lax
from jax.experimental import pallas as pl
from jax.experimental.pallas import tpu as pltpu

_LANE = 128
_SUBLANE = 8
_MAX_TILE_B = 4096                     # rows per tile (v7x-safe with f32-scratch accounting)
_VMEM_TILE_BUDGET = 20 * 1024 * 1024   # streamed bf16 buffers + live f32 intermediates


def _round_up(x, m):
    return ((x + m - 1) // m) * m


def _softplus(x):
    # numerically stable softplus(x) = log(1 + exp(x))
    return jnp.maximum(x, 0.0) + jnp.log1p(jnp.exp(-jnp.abs(x)))


def _pick_tile_b(batch, d, embed_itemsize):
    """Rows per tile.  Never exceeds the true batch, so the only padding Pallas
    ever sees is the masked partial last block.  Budget counts the 3 streamed
    bf16 inputs x 2 pipeline buffers PLUS ~4 live f32 (TB, D) intermediates."""
    if batch <= _SUBLANE:
        return batch                        # single block == full array dims (always legal)
    bytes_per_row = d * (3 * 2 * embed_itemsize + 4 * 4)
    cap = max(_SUBLANE, (_VMEM_TILE_BUDGET // bytes_per_row) // _SUBLANE * _SUBLANE)
    tb = min(_MAX_TILE_B, cap, (batch // _SUBLANE) * _SUBLANE)
    return max(tb, _SUBLANE)


def _make_loss_kernel(tile_b, batch, n_rel_pad):
    """Per-tile kernel. `batch` = true (unpadded) batch size."""
    ragged = (batch % tile_b) != 0

    def kernel(ridx_ref, rel_ref, h_ref, pos_ref, neg_ref, out_ref):
        # (TB, D) bf16 blocks -> f32 math
        h = h_ref[...].astype(jnp.float32)                       # (TB, D)

        # Fused relation lookup: one-hot (TB, R) @ table (R, D) on the MXU.
        r_idx = ridx_ref[...]                                    # (TB, 1) int32
        onehot = (r_idx == lax.broadcasted_iota(
            jnp.int32, (r_idx.shape[0], n_rel_pad), 1)).astype(jnp.float32)
        r = jnp.dot(onehot, rel_ref[...].astype(jnp.float32),
                    preferred_element_type=jnp.float32)          # (TB, D)

        hr = h + r                                               # (TB, D)
        pos_score = jnp.sum(hr * pos_ref[...].astype(jnp.float32),
                            axis=1, keepdims=True)               # (TB, 1)
        neg_score = jnp.sum(hr * neg_ref[...].astype(jnp.float32),
                            axis=1, keepdims=True)               # (TB, 1)

        # BCEWithLogits(pos, ones)  -> softplus(-pos_score)
        # BCEWithLogits(neg, zeros) -> softplus( neg_score)
        per_row = _softplus(-pos_score) + _softplus(neg_score)   # (TB, 1)

        if ragged:
            # Hard-select mask for the partial last block: OOB rows may hold
            # arbitrary VMEM contents (possibly NaN/Inf); jnp.where makes that
            # numerically safe (do NOT turn this into a multiplicative mask).
            row = (pl.program_id(0) * tile_b
                   + lax.broadcasted_iota(jnp.int32, per_row.shape, 0))
            per_row = jnp.where(row < batch, per_row, 0.0)

        partial = jnp.sum(per_row)                               # scalar f32
        # lane-dense, unmasked store of the per-tile partial sum
        out_ref[...] = jnp.broadcast_to(partial, out_ref.shape).astype(jnp.float32)

    return kernel


def ecfkg_calc_loss_pallas(rel_table_pad, r_idx, h_embed, pos_t_embed, neg_t_embed):
    """loss = mean(softplus(-pos_score)) + mean(softplus(neg_score)).

    rel_table_pad : (n_rel_pad, D) full relation table (kept VMEM-resident)
    r_idx         : (B,) int relation ids (gather fused in-kernel)
    h/pos/neg     : (B, D) gathered entity/user rows (bf16)
    """
    b, d = h_embed.shape
    n_rel_pad = rel_table_pad.shape[0]
    itemsize = int(jnp.dtype(h_embed.dtype).itemsize)
    tile_b = _pick_tile_b(b, d, itemsize)
    num_tiles = pl.cdiv(b, tile_b)              # partial last block, no jnp.pad

    r_idx2 = r_idx.astype(jnp.int32).reshape(b, 1)

    embed_spec = pl.BlockSpec((tile_b, d), lambda i: (i, 0))
    ridx_spec = pl.BlockSpec((tile_b, 1), lambda i: (i, 0))
    rel_spec = pl.BlockSpec((n_rel_pad, d), lambda i: (0, 0))   # same block -> fetched once
    out_spec = pl.BlockSpec((1, _SUBLANE, _LANE), lambda i: (i, 0, 0))

    cost = pl.CostEstimate(
        flops=int(5 * b * d + 2 * b * n_rel_pad * d + 10 * b),
        transcendentals=int(4 * b),
        bytes_accessed=int(3 * b * d * itemsize + b * 4
                           + n_rel_pad * d * itemsize
                           + num_tiles * _SUBLANE * _LANE * 4),
    )

    partials = pl.pallas_call(
        _make_loss_kernel(tile_b, b, n_rel_pad),
        out_shape=jax.ShapeDtypeStruct((num_tiles, _SUBLANE, _LANE), jnp.float32),
        grid=(num_tiles,),
        in_specs=[ridx_spec, rel_spec, embed_spec, embed_spec, embed_spec],
        out_specs=out_spec,
        compiler_params=pltpu.CompilerParams(
            dimension_semantics=("parallel",),     # shards the batch axis across TCs (v7x)
            vmem_limit_bytes=32 * 1024 * 1024,
        ),
        cost_estimate=cost,
    )(r_idx2, rel_table_pad, h_embed, pos_t_embed, neg_t_embed)

    # tiny final reduction + mean normalization (sum of softplus / true B)
    return jnp.sum(partials[:, 0, 0]) / jnp.float32(b)


class ECFKGPallas:
    """JAX/Pallas port of ECFKG (forward == calc_loss in 'train' mode)."""

    def __init__(self, n_users, n_entities, n_relations, embed_dim, key,
                 embed_dtype=jnp.bfloat16):
        self.n_users = n_users
        self.n_entities = n_entities
        self.n_relations = n_relations
        self.embed_dim = embed_dim
        k1, k2 = jax.random.split(key)
        # nn.Embedding default init is N(0, 1); stored in bf16 (bandwidth-bound op)
        self.relation_embed = jax.random.normal(
            k1, (n_relations, embed_dim), dtype=jnp.float32).astype(embed_dtype)
        self.entity_user_embed = jax.random.normal(
            k2, (n_entities + n_users, embed_dim), dtype=jnp.float32).astype(embed_dtype)
        # sublane-aligned copy of the tiny relation table for the fused in-kernel lookup
        self._n_rel_pad = _round_up(max(n_relations, _SUBLANE), _SUBLANE)
        rel = self.relation_embed
        if self._n_rel_pad != n_relations:
            rel = jnp.pad(rel, ((0, self._n_rel_pad - n_relations), (0, 0)))
        self._relation_embed_padded = rel

    def calc_loss(self, h, r, pos_t, neg_t):
        # Only the large entity/user-table gathers stay in XLA; the relation
        # lookup is fused into the kernel (VMEM-resident table + one-hot MXU).
        # TODO(synk): fuse the entity gather via scalar-prefetched indices +
        # pl.ANY table + batched row DMAs once D makes per-row DMAs worthwhile.
        h_embed = jnp.take(self.entity_user_embed, h, axis=0)
        pos_t_embed = jnp.take(self.entity_user_embed, pos_t, axis=0)
        neg_t_embed = jnp.take(self.entity_user_embed, neg_t, axis=0)
        return ecfkg_calc_loss_pallas(self._relation_embed_padded, r,
                                      h_embed, pos_t_embed, neg_t_embed)

    def forward(self, mode, *inputs):
        if mode == 'train':
            return self.calc_loss(*inputs)
        raise ValueError(f"unsupported mode: {mode}")


def _reference_loss(model, h, r, pos_t, neg_t):
    # pure-JAX reference for verification (same bf16 params, f32 math)
    r_e = model.relation_embed[r].astype(jnp.float32)
    h_e = model.entity_user_embed[h].astype(jnp.float32)
    p_e = model.entity_user_embed[pos_t].astype(jnp.float32)
    n_e = model.entity_user_embed[neg_t].astype(jnp.float32)
    pos_score = jnp.sum((h_e + r_e) * p_e, axis=1)
    neg_score = jnp.sum((h_e + r_e) * n_e, axis=1)
    return (jnp.mean(jax.nn.softplus(-pos_score))
            + jnp.mean(jax.nn.softplus(neg_score)))


if __name__ == "__main__":
    key = jax.random.PRNGKey(0)
    k_model, k_h, k_r, k_p, k_n = jax.random.split(key, 5)

    n_users, n_entities, n_relations, embed_dim = 16, 32, 4, 128
    model = ECFKGPallas(n_users, n_entities, n_relations, embed_dim, k_model)
    n_total = n_entities + n_users

    for batch_size in (8, 13):   # 13 exercises the partial-last-block masking path
        kh = jax.random.fold_in(k_h, batch_size)
        kr = jax.random.fold_in(k_r, batch_size)
        kp = jax.random.fold_in(k_p, batch_size)
        kn = jax.random.fold_in(k_n, batch_size)

        h = jax.random.randint(kh, (batch_size,), 0, n_total, dtype=jnp.int32)
        r = jax.random.randint(kr, (batch_size,), 0, n_relations, dtype=jnp.int32)
        pos_t = jax.random.randint(kp, (batch_size,), 0, n_total, dtype=jnp.int32)
        neg_t = jax.random.randint(kn, (batch_size,), 0, n_total, dtype=jnp.int32)

        loss = jax.block_until_ready(model.forward('train', h, r, pos_t, neg_t))
        ref = jax.block_until_ready(_reference_loss(model, h, r, pos_t, neg_t))
        assert jnp.allclose(loss, ref, rtol=1e-4, atol=1e-4), (batch_size, loss, ref)

    print("KERNEL_OK")
</pallas_src>

<mosaic_0001>
module attributes {stable_mosaic.version = 11 : i64} {
  func.func @kernel(%arg0: i32, %arg1: memref<8x1xi32, #tpu.memory_space<vmem>>, %arg2: memref<8x128xbf16, #tpu.memory_space<vmem>>, %arg3: memref<8x128xbf16, #tpu.memory_space<vmem>>, %arg4: memref<8x128xbf16, #tpu.memory_space<vmem>>, %arg5: memref<8x128xbf16, #tpu.memory_space<vmem>>, %arg6: memref<1x8x128xf32, #tpu.memory_space<vmem>>) attributes {dimension_semantics = [#tpu.dimension_semantics<parallel>], iteration_bounds = array<i64: 1>, scalar_prefetch = 0 : i64, scratch_operands = 0 : i64, tpu.core_type = #tpu.core_type<tc>, window_params = [{transform_indices = @transform_0, window_bounds = array<i64: 8, 1>}, {pipeline_mode = #tpu.pipeline_mode<synchronous>, transform_indices = @transform_1, window_bounds = array<i64: 8, 128>}, {transform_indices = @transform_2, window_bounds = array<i64: 8, 128>}, {transform_indices = @transform_3, window_bounds = array<i64: 8, 128>}, {transform_indices = @transform_4, window_bounds = array<i64: 8, 128>}, {transform_indices = @transform_5, window_bounds = array<i64: 1, 8, 128>}]} {
    %c0 = arith.constant 0 : index
    %c0_0 = arith.constant 0 : index
    %0 = vector.load %arg3[%c0, %c0_0] : memref<8x128xbf16, #tpu.memory_space<vmem>>, vector<8x128xbf16>
    %1 = arith.extf %0 : vector<8x128xbf16> to vector<8x128xf32>
    %c0_1 = arith.constant 0 : index
    %c0_2 = arith.constant 0 : index
    %2 = vector.load %arg1[%c0_1, %c0_2] : memref<8x1xi32, #tpu.memory_space<vmem>>, vector<8x1xi32>
    %3 = tpu.iota {dimensions = array<i32: 1>} : vector<8x8xi32>
    %4 = vector.broadcast %2 : vector<8x1xi32> to vector<8x8xi32>
    %5 = arith.cmpi eq, %4, %3 : vector<8x8xi32>
    %6 = arith.extui %5 : vector<8x8xi1> to vector<8x8xi32>
    %7 = arith.sitofp %6 : vector<8x8xi32> to vector<8x8xf32>
    %c0_3 = arith.constant 0 : index
    %c0_4 = arith.constant 0 : index
    %8 = vector.load %arg2[%c0_3, %c0_4] : memref<8x128xbf16, #tpu.memory_space<vmem>>, vector<8x128xbf16>
    %9 = arith.extf %8 : vector<8x128xbf16> to vector<8x128xf32>
    %cst = arith.constant dense<0.000000e+00> : vector<8x128xf32>
    %10 = tpu.matmul %7, %9, %cst {dimension_numbers = #tpu.dot_dimension_numbers<[1], [0], [0], [1], [0, 0, 1, 1], [], []>} : vector<8x8xf32>, vector<8x128xf32>, vector<8x128xf32> -> vector<8x128xf32>
    %11 = arith.addf %1, %10 : vector<8x128xf32>
    %c0_5 = arith.constant 0 : index
    %c0_6 = arith.constant 0 : index
    %12 = vector.load %arg4[%c0_5, %c0_6] : memref<8x128xbf16, #tpu.memory_space<vmem>>, vector<8x128xbf16>
    %13 = arith.extf %12 : vector<8x128xbf16> to vector<8x128xf32>
    %14 = arith.mulf %11, %13 : vector<8x128xf32>
    %cst_7 = arith.constant dense<0.000000e+00> : vector<8xf32>
    %15 = vector.multi_reduction <add>, %14, %cst_7 [1] : vector<8x128xf32> to vector<8xf32>
    %16 = vector.shape_cast %15 : vector<8xf32> to vector<8x1xf32>
    %c0_8 = arith.constant 0 : index
    %c0_9 = arith.constant 0 : index
    %17 = vector.load %arg5[%c0_8, %c0_9] : memref<8x128xbf16, #tpu.memory_space<vmem>>, vector<8x128xbf16>
    %18 = arith.extf %17 : vector<8x128xbf16> to vector<8x128xf32>
    %19 = arith.mulf %11, %18 : vector<8x128xf32>
    %cst_10 = arith.constant dense<0.000000e+00> : vector<8xf32>
    %20 = vector.multi_reduction <add>, %19, %cst_10 [1] : vector<8x128xf32> to vector<8xf32>
    %21 = vector.shape_cast %20 : vector<8xf32> to vector<8x1xf32>
    %cst_11 = arith.constant 0.000000e+00 : f32
    %22 = vector.broadcast %cst_11 : f32 to vector<8x1xf32>
    %23 = arith.subf %22, %16 : vector<8x1xf32>
    %cst_12 = arith.constant 0.000000e+00 : f32
    %24 = vector.broadcast %cst_12 : f32 to vector<8x1xf32>
    %25 = arith.maximumf %23, %24 : vector<8x1xf32>
    %26 = math.absf %23 : vector<8x1xf32>
    %cst_13 = arith.constant 0.000000e+00 : f32
    %27 = vector.broadcast %cst_13 : f32 to vector<8x1xf32>
    %28 = arith.subf %27, %26 : vector<8x1xf32>
    %29 = math.exp %28 : vector<8x1xf32>
    %30 = math.log1p %29 : vector<8x1xf32>
    %31 = arith.addf %25, %30 : vector<8x1xf32>
    %cst_14 = arith.constant 0.000000e+00 : f32
    %32 = vector.broadcast %cst_14 : f32 to vector<8x1xf32>
    %33 = arith.maximumf %21, %32 : vector<8x1xf32>
    %34 = math.absf %21 : vector<8x1xf32>
    %cst_15 = arith.constant 0.000000e+00 : f32
    %35 = vector.broadcast %cst_15 : f32 to vector<8x1xf32>
    %36 = arith.subf %35, %34 : vector<8x1xf32>
    %37 = math.exp %36 : vector<8x1xf32>
    %38 = math.log1p %37 : vector<8x1xf32>
    %39 = arith.addf %33, %38 : vector<8x1xf32>
    %40 = arith.addf %31, %39 : vector<8x1xf32>
    %41 = vector.shape_cast %40 : vector<8x1xf32> to vector<1x8x1xf32>
    %cst_16 = arith.constant dense<0.000000e+00> : vector<1xf32>
    %42 = vector.multi_reduction <add>, %41, %cst_16 [1, 2] : vector<1x8x1xf32> to vector<1xf32>
    %43 = vector.shape_cast %42 : vector<1xf32> to vector<1x1x1xf32>
    %44 = vector.extract %43[0, 0, 0] : f32 from vector<1x1x1xf32>
    %45 = vector.broadcast %44 : f32 to vector<1x8x128xf32>
    %c0_17 = arith.constant 0 : index
    %c0_18 = arith.constant 0 : index
    %c0_19 = arith.constant 0 : index
    %46 = vector.load %arg6[%c0_17, %c0_18, %c0_19] : memref<1x8x128xf32, #tpu.memory_space<vmem>>, vector<1x8x128xf32>
    tpu.vector_store %arg6[%c0_17, %c0_18, %c0_19], %45 {strides = array<i32>} : memref<1x8x128xf32, #tpu.memory_space<vmem>>, vector<1x8x128xf32>,
    return
  }
  func.func @transform_0(%arg0: i32) -> (i32, i32) {
    %c0_i32 = arith.constant 0 : i32
    %c0_i32_0 = arith.constant 0 : i32
    return %arg0, %c0_i32 : i32, i32
  }
  func.func @transform_1(%arg0: i32) -> (i32, i32) {
    %c0_i32 = arith.constant 0 : i32
    %c0_i32_0 = arith.constant 0 : i32
    %c0_i32_1 = arith.constant 0 : i32
    return %c0_i32, %c0_i32_0 : i32, i32
  }
  func.func @transform_2(%arg0: i32) -> (i32, i32) {
    %c0_i32 = arith.constant 0 : i32
    %c0_i32_0 = arith.constant 0 : i32
    return %arg0, %c0_i32 : i32, i32
  }
  func.func @transform_3(%arg0: i32) -> (i32, i32) {
    %c0_i32 = arith.constant 0 : i32
    %c0_i32_0 = arith.constant 0 : i32
    return %arg0, %c0_i32 : i32, i32
  }
  func.func @transform_4(%arg0: i32) -> (i32, i32) {
    %c0_i32 = arith.constant 0 : i32
    %c0_i32_0 = arith.constant 0 : i32
    return %arg0, %c0_i32 : i32, i32
  }
  func.func @transform_5(%arg0: i32) -> (i32, i32, i32) {
    %c0_i32 = arith.constant 0 : i32
    %c0_i32_0 = arith.constant 0 : i32
    %c0_i32_1 = arith.constant 0 : i32
    return %arg0, %c0_i32, %c0_i32_0 : i32, i32, i32
  }
}

</mosaic_0001>

<llo_original>
// kernel: tpu_custom_call.1
$region0: #{tpu_custom_call.1}
  #allocation0 [shape = 'u32[]', space=smem, size = 0x4, offset = 0x4, fixed_abs, tag = 'smem constant byte address 0x4 - core index']
  #allocation1 [shape = 'u32[144,128]{1,0:T(1,128)}', space=vmem, size = 0x12000, scoped, tag = 'internal scratch']
  %s0 = inlined_call_operand.vmem [shape: s32[8,1], index: 0, kind: input, shape index: {}]
  %s1 = inlined_call_operand.vmem [shape: bf16[8,128], index: 1, kind: input, shape index: {}]
  %s2 = inlined_call_operand.vmem [shape: bf16[8,128], index: 2, kind: input, shape index: {}]
  %s3 = inlined_call_operand.vmem [shape: bf16[8,128], index: 3, kind: input, shape index: {}]
  %s4 = inlined_call_operand.vmem [shape: bf16[8,128], index: 4, kind: input, shape index: {}]
  %s5 = inlined_call_operand.hbm [shape: f32[1,8,128], index: 5, kind: output, shape index: {}]
  %s6 = sld [smem:[#allocation0]]
  $region30: #{tpu_custom_call.1} parent=0
    _
  %s8 = ssub.s32 1, %s6
  %s9 = scalar_select 0, %s8, %s6
  $region1: #{tpu_custom_call.1} parent=0
    #allocation2 [shape = 'u8[4096]{0}', space=vmem, size = 0x1000, scoped, tag = 'output window, operand 0, single buffered']
    #allocation3 [shape = 's32[1]{0}', space=sflag, size = 0x4, scoped, tag = 'scoped memory for tpu_custom_call.1']
    %10 = vsyncpa [#allocation3], 0
    // Predicated region
    $region2: #{tpu_custom_call.1} parent=1 // pred_check
      _
    $region3: #{tpu_custom_call.1} parent=1 // pred_check_branch
      %12 = sbr.rel (0) target = $region5
    $region4: #{tpu_custom_call.1} parent=1 // pred_region
      _
    $region5: #{tpu_custom_call.1} parent=1 // pred_fallthru
      _
    // Predicated region
    $region6: #{tpu_custom_call.1} parent=1 // pred_check
      _
    $region7: #{tpu_custom_call.1} parent=1 // pred_check_branch
      %14 = sbr.rel (0) target = $region9
    $region8: #{tpu_custom_call.1} parent=1 // pred_region
      _
    $region9: #{tpu_custom_call.1} parent=1 // pred_fallthru
      _
    // Predicated region
    $region10: #{tpu_custom_call.1} parent=1 // pred_check
      _
    $region11: #{tpu_custom_call.1} parent=1 // pred_check_branch
      %16 = sbr.rel (0) target = $region13
    $region12: #{tpu_custom_call.1} parent=1 // pred_region
      _
    $region13: #{tpu_custom_call.1} parent=1 // pred_fallthru
      _
    // Predicated region
    $region14: #{tpu_custom_call.1} parent=1 // pred_check
      _
    $region15: #{tpu_custom_call.1} parent=1 // pred_check_branch
      %18 = sbr.rel (0) target = $region17
    $region16: #{tpu_custom_call.1} parent=1 // pred_region
      _
    $region17: #{tpu_custom_call.1} parent=1 // pred_fallthru
      _
    // Predicated region
    $region18: #{tpu_custom_call.1} parent=1 // pred_check
      _
    $region19: #{tpu_custom_call.1} parent=1 // pred_check_branch
      %20 = sbr.rel (0) target = $region21
    $region20: #{tpu_custom_call.1} parent=1 // pred_region
      _
    $region21: #{tpu_custom_call.1} parent=1 // pred_fallthru
      _
    %v21 = vld [vmem:[%s2] sm:$0xf]
    %v22 = vunpack.c.l.bf16 %v21
    %v23 = vld [vmem:[%s0] sm:$0xff]
    %v24 = vlaneseq
    %v25 = vand.u32 %v24, 127
    %26 = vset.pattern.permute.xlu0 0
    %27 = vperm.xlu0 %26, %v23
    %v28 = vpop.permute.xlu0 %27
    %vm29 = vcmp.eq.s32.totalorder %v28, %v25
    %v30 = vsel %vm29, 1, 0
    %v31 = vcvt.s32.f32 %v30
    %v32 = vld [vmem:[%s1] sm:$0xf]
    %v33 = vunpack.c.l.bf16 %v32
    %vm34 = vcmask 64512
    %v36 = vsel %vm34, %v31, 0
    %38 = vmatprep.subr.mxu0 0.0
    %39 = vmatpush1.msra.mxu0 %v33
    %40 = vmatprep.subr.mxu0 0.0
    %41 = vmatpush1.msra.mxu0 0.0
    %42 = vmatprep.subr.mxu0 0.0
    %43 = vmatpush1.msra.mxu0 0.0
    %44 = vmatprep.subr.mxu0 0.0
    %45 = vmatpush1.msra.mxu0 0.0
    %46 = vmatprep.subr.mxu0 0.0
    %47 = vmatpush1.msra.mxu0 0.0
    %48 = vmatprep.subr.mxu0 0.0
    %49 = vmatpush1.msra.mxu0 0.0
    %50 = vmatprep.subr.mxu0 0.0
    %51 = vmatpush1.msra.mxu0 0.0
    %52 = vmatprep.subr.mxu0 0.0
    %53 = vmatpush1.msra.mxu0 0.0
    %54 = vmatprep.subr.mxu0 0.0
    %55 = vmatpush1.msra.mxu0 0.0
    %56 = vmatprep.subr.mxu0 0.0
    %57 = vmatpush1.msra.mxu0 0.0
    %58 = vmatprep.subr.mxu0 0.0
    %59 = vmatpush1.msra.mxu0 0.0
    %60 = vmatprep.subr.mxu0 0.0
    %61 = vmatpush1.msra.mxu0 0.0
    %62 = vmatprep.subr.mxu0 0.0
    %63 = vmatpush1.msra.mxu0 0.0
    %64 = vmatprep.subr.mxu0 0.0
    %65 = vmatpush1.msra.mxu0 0.0
    %66 = vmatprep.subr.mxu0 0.0
    %67 = vmatpush1.msra.mxu0 0.0
    %68 = vmatprep.subr.mxu0 0.0
    %69 = vmatpush1.msra.mxu0 0.0
    %70 = vmatprep.subr.mxu0 0.0
    %71 = vmatpush1.msra.mxu0 0.0
    %72 = vmatprep.subr.mxu0 0.0
    %73 = vmatpush1.msra.mxu0 0.0
    %74 = vmatprep.subr.mxu0 0.0
    %75 = vmatpush1.msra.mxu0 0.0
    %76 = vmatprep.subr.mxu0 0.0
    %77 = vmatpush1.msra.mxu0 0.0
    %78 = vmatprep.subr.mxu0 0.0
    %79 = vmatpush1.msra.mxu0 0.0
    %80 = vmatprep.subr.mxu0 0.0
    %81 = vmatpush1.msra.mxu0 0.0
    %82 = vmatprep.subr.mxu0 0.0
    %83 = vmatpush1.msra.mxu0 0.0
    %84 = vmatprep.subr.mxu0 0.0
    %85 = vmatpush1.msra.mxu0 0.0
    %86 = vmatprep.subr.mxu0 0.0
    %87 = vmatpush1.msra.mxu0 0.0
    %88 = vmatprep.subr.mxu0 0.0
    %89 = vmatpush1.msra.mxu0 0.0
    %90 = vmatprep.subr.mxu0 0.0
    %91 = vmatpush1.msra.mxu0 0.0
    %92 = vmatprep.subr.mxu0 0.0
    %93 = vmatpush1.msra.mxu0 0.0
    %94 = vmatprep.subr.mxu0 0.0
    %95 = vmatpush1.msra.mxu0 0.0
    %96 = vmatprep.subr.mxu0 0.0
    %97 = vmatpush1.msra.mxu0 0.0
    %98 = vmatprep.subr.mxu0 0.0
    %99 = vmatpush1.msra.mxu0 0.0
    %100 = vmatprep.subr.mxu0 0.0
    %101 = vmatpush1.msra.mxu0 0.0
    %102 = vmatprep.mubr.f32.mxu0 0.0
    %103 = vmatmul.mubr.f32.gmra.mrb[0].mxu0 %v36
    %v104 = vpop.f32.mrb[0].mxu0
    %v105 = vadd.f32 0.0, %v104
    %v106 = vpop.f32.mrb[0].mxu0
    %107 = vdwg.mxu0
    %v108 = vadd.f32 %v22, %v105
    %v109 = vld [vmem:[%s3] sm:$0xf]
    %v110 = vunpack.c.l.bf16 %v109
    %v111 = vmul.f32 %v108, %v110
    %112 = vadd.xlane.f32.xlu0 %v111
    %v113 = vpop.xlane.xlu0 %112
    %v114 = vld [vmem:[%s4] sm:$0xf]
    %v115 = vunpack.c.l.bf16 %v114
    %v116 = vmul.f32 %v108, %v115
    %117 = vadd.xlane.f32.xlu0 %v116
    %v118 = vpop.xlane.xlu0 %117
    %v119 = vsub.f32 0.0, %v113
    %v120 = vmax.f32 %v119, 0.0
    %v121 = vand.u32 2147483647, %v119
    %v122 = vsub.f32 0.0, %v121
    %v123 = vmul.f32 %v122, 1.442695
    %v124 = vpow.pop %v123
    %v125 = vadd.f32 %v124, 1.0
    %v126 = vlog2.pop %v125
    %v127 = vmul.f32 %v126, 0.6931472
    %v128 = vmul.f32 -0.5, %v124
    %v129 = vadd.f32 %v128, 1.0
    %v130 = vmul.f32 %v129, %v124
    %v131 = vand.u32 2147483647, %v124
    %vm132 = vcmp.lt.f32.partialorder %v131, 0.0004427343
    %v133 = vsel %vm132, %v130, %v127
    %v134 = vadd.f32 %v120, %v133
    %v135 = vmax.f32 %v118, 0.0
    %v136 = vand.u32 2147483647, %v118
    %v137 = vsub.f32 0.0, %v136
    %v138 = vmul.f32 %v137, 1.442695
    %v139 = vpow.pop %v138
    %v140 = vadd.f32 %v139, 1.0
    %v141 = vlog2.pop %v140
    %v142 = vmul.f32 %v141, 0.6931472
    %v143 = vmul.f32 -0.5, %v139
    %v144 = vadd.f32 %v143, 1.0
    %v145 = vmul.f32 %v144, %v139
    %v146 = vand.u32 2147483647, %v139
    %vm147 = vcmp.lt.f32.partialorder %v146, 0.0004427343
    %v148 = vsel %vm147, %v145, %v142
    %v149 = vadd.f32 %v135, %v148
    %v150 = vadd.f32 %v134, %v149
    %vm151 = vcmask 7168
    %v152 = vsel %vm151, %v150, 0.0
    %153 = vadd.xlane.f32.xlu0 %v152
    %v154 = vpop.xlane.xlu0 %153
    %v155 = vrot.slane %v154, 4
    %v156 = vadd.f32 %v154, %v155
    %v157 = vrot.slane %v156, 2
    %v158 = vadd.f32 %v156, %v157
    %v159 = vrot.slane %v158, 1
    %v160 = vadd.f32 %v158, %v159
    %s161 = vtos %v160
    %v162 = vstv %s161
    %163 = vst [vmem:[#allocation2] sm:$0xff] %v162
    // Predicated region
    $region22: #{tpu_custom_call.1} parent=1 // pred_check
      _
    $region23: #{tpu_custom_call.1} parent=1 // pred_check_branch
      %165 = sbr.rel (0) target = $region25
    $region24: #{tpu_custom_call.1} parent=1 // pred_region
      %s167 = ssub.s32 128, 128
      %168 = vsyncadd [#allocation3], %s167
      %s170 = sshll.u32 [#allocation2], 4
      %s171 = int_to_ptr.vmem [resolvable:$true] %s170
      %173 = dma.vmem_to_hbm [thread:$0]  %s171, 128, %s5, [#allocation3]
    $region25: #{tpu_custom_call.1} parent=1 // pred_fallthru
      _
    // Predicated region
    $region26: #{tpu_custom_call.1} parent=1 // pred_check
      _
    $region27: #{tpu_custom_call.1} parent=1 // pred_check_branch
      %175 = sbr.rel (0) target = $region29
    $region28: #{tpu_custom_call.1} parent=1 // pred_region
      %176 = dma.done [#allocation3], 128
    $region29: #{tpu_custom_call.1} parent=1 // pred_fallthru
      _
    %177 = vsyncpa [#allocation3], 1

</llo_original>
